<compile_context>
chip_gen: v6e
topology: v6e:2x2x1
jax: 0.10.0
libtpu: 0.0.40
codegen_flags: <defaults>
</compile_context>

<pallas_src>
import jax
import jax.numpy as jnp
from jax import lax
from jax.experimental import pallas as pl
from jax.experimental.pallas import tpu as pltpu


def _inspector_kernel(x_ref, wfr_ref, bsum_ref, bf_ref, wh_ref, bh_ref,
                      logits_ref, feat_ref, acc_ref):
    # x_ref:      [block_b*C, block_hw]  raw (un-normalized) input tile
    # wfr_ref:    [block_b*C, F]         folded feature weight, tiled per batch row
    # bsum_ref:   [block_b, block_b*C]   0/1 matrix summing the C rows of each batch
    # bf_ref:     [1, F]                 folded feature bias
    # wh_ref:     [F, NC]                classification head weight
    # bh_ref:     [1, NC]                classification head bias
    # logits_ref: [block_b, NC]          output, resident across the HW grid axis
    # feat_ref:   [block_b, F]           output, resident across the HW grid axis
    # acc_ref:    [block_b*C, 128]       f32 scratch: lane-parallel running sums
    rows, block_hw = x_ref.shape
    n_chunks, rem = divmod(block_hw, 128)
    h = pl.program_id(1)

    @pl.when(h == 0)
    def _():
        acc_ref[...] = jnp.zeros_like(acc_ref)

    # Lane-parallel partial sums: cast each 128-lane chunk to f32 and add on
    # the VPU; one accumulator read-modify-write per grid step.
    if n_chunks > 0:
        partial = jnp.zeros((rows, 128), jnp.float32)
        if n_chunks <= 16:
            for j in range(n_chunks):                      # static, LLO-visible
                partial = partial + x_ref[:, j * 128:(j + 1) * 128].astype(jnp.float32)
        else:
            def body(j, p):
                off = pl.multiple_of(j * 128, 128)
                return p + x_ref[:, pl.ds(off, 128)].astype(jnp.float32)
            partial = lax.fori_loop(0, n_chunks, body, partial)
        acc_ref[...] += partial
    if rem > 0:
        # Only reachable when block_hw == HW and HW % 128 != 0 (single step).
        acc_ref[:, :rem] += x_ref[:, n_chunks * 128:].astype(jnp.float32)

    @pl.when(h == pl.num_programs(1) - 1)
    def _():
        # One cross-lane reduce, then regroup the (b, c) rows into batch rows
        # with a 0/1 block-sum matmul (no reshape/relayout needed), and apply
        # the folded feature projection + classification head.
        s = jnp.sum(acc_ref[...], axis=-1, keepdims=True)         # [rows, 1]
        contrib = s * wfr_ref[...]                                 # [rows, F]
        feats = (jnp.dot(bsum_ref[...], contrib,
                         preferred_element_type=jnp.float32)
                 + bf_ref[...])                                    # [block_b, F]
        feat_ref[...] = feats.astype(feat_ref.dtype)
        logits_ref[...] = (jnp.dot(feats, wh_ref[...],
                                   preferred_element_type=jnp.float32)
                           + bh_ref[...]).astype(logits_ref.dtype)


def _choose_tiles(B, C, HW, itemsize, budget):
    """Pick (block_b, block_hw) for the (B*C, HW) streaming layout."""
    sub = max(8, 32 // itemsize)                 # sublane granularity for dtype

    def rows_padded(db):
        return -(-(db * C) // sub) * sub

    def tile_bytes(db, thw):
        return rows_padded(db) * thw * itemsize

    # Legal batch blocks: divisor of B and sublane-legal second-to-last dim.
    legal_b = [d for d in range(1, B + 1)
               if B % d == 0 and ((d * C) % sub == 0 or d == B)]
    # Prefer >= 2 batch programs so v7x's second TensorCore gets work.
    multi = [d for d in legal_b if B // d >= 2]
    cands = multi if multi else legal_b

    # Preferred: whole spatial extent per step (one long contiguous DMA per
    # row block), largest block_b that still fits the VMEM tile budget.
    fits_full = [d for d in cands if tile_bytes(d, HW) <= budget]
    if fits_full:
        return max(fits_full), HW

    # Otherwise tile the spatial axis (multiples of 128 only, per the (8,128)
    # BlockSpec rule); shrink block_b before shrinking block_hw.
    if HW % 128 != 0:
        return min(cands), HW                    # full extent is the only legal block
    hw_divs = [t for t in range(128, HW, 128) if HW % t == 0]
    for d in sorted(cands):
        fits = [t for t in hw_divs if tile_bytes(d, t) <= budget]
        if fits:
            return d, max(fits)
    return min(cands), 128


def inspector_forward(x, mean, std, w_feat, b_feat, w_head, b_head,
                      *, block_b=None, block_hw=None,
                      x_tile_budget_bytes=8 * 1024 * 1024):
    """Runs the InspectorModel forward. Returns (logits, features)."""
    B, C, H, W = x.shape
    HW = H * W
    F = w_feat.shape[1]
    NC = w_head.shape[1]
    itemsize = x.dtype.itemsize
    sub = max(8, 32 // itemsize)

    # Cap the per-tile budget so double/triple-buffered tiles stay well under
    # v7x's 64 MiB physical VMEM.
    budget = int(min(x_tile_budget_bytes, 12 * 1024 * 1024))
    auto_b, auto_hw = _choose_tiles(B, C, HW, itemsize, budget)
    if block_b is None:
        block_b = auto_b
    if block_hw is None:
        block_hw = auto_hw

    # ---- host-side fold of normalization + pooling scale into wf/bf --------
    mean_f = mean.astype(jnp.float32)
    invstd = 1.0 / std.astype(jnp.float32)
    w_feat_f = w_feat.astype(jnp.float32)
    wf = (invstd / HW)[:, None] * w_feat_f                          # [C, F]
    bf = (b_feat.astype(jnp.float32)
          - (mean_f * invstd) @ w_feat_f).reshape(1, F)             # [1, F]
    wf_rows = jnp.tile(wf, (block_b, 1))                            # [block_b*C, F]
    bsum = jnp.repeat(jnp.eye(block_b, dtype=jnp.float32), C, axis=1)  # [block_b, block_b*C]
    wh = w_head.astype(jnp.float32)                                 # [F, NC]
    bh = b_head.astype(jnp.float32).reshape(1, NC)                  # [1, NC]

    # Keep the input dtype (no host-side cast/copy of the big tensor); pack
    # batch*channel densely onto sublanes.  The reshape of contiguous dims is
    # free; the kernel casts each 128-lane chunk to f32 in-register.
    x_flat = x.reshape(B * C, HW)

    grid = (B // block_b, HW // block_hw)

    # Third buffer on the x stream only when the spatial axis is genuinely
    # tiled (short steps expose DMA issue latency); depth-2 for whole rows.
    x_index = lambda b, h: (b, h)
    if block_hw < HW and grid[1] >= 3:
        x_spec = pl.BlockSpec((block_b * C, block_hw), x_index,
                              pipeline_mode=pl.Buffered(3))
        n_buf = 3
    else:
        x_spec = pl.BlockSpec((block_b * C, block_hw), x_index)
        n_buf = 2

    # ---- VMEM limit scaled from actual buffer sizes ------------------------
    rowsp = -(-(block_b * C) // sub) * sub
    x_tile_bytes = rowsp * block_hw * itemsize
    weight_bytes = 4 * (wf_rows.size + bsum.size + bf.size + wh.size + bh.size)
    out_bytes = 4 * block_b * (F + NC)
    acc_bytes = rowsp * 128 * 4
    needed = (n_buf * x_tile_bytes + 2 * (weight_bytes + out_bytes)
              + acc_bytes + (2 << 20))
    vmem_limit = int(max(needed, 32 * 1024 * 1024))

    cost = pl.CostEstimate(
        flops=B * C * HW + 4 * B * C * F + 2 * B * F * NC,
        transcendentals=0,
        bytes_accessed=(x_flat.size * itemsize + weight_bytes
                        + B * (F + NC) * 4),
    )

    logits, features = pl.pallas_call(
        _inspector_kernel,
        out_shape=(
            jax.ShapeDtypeStruct((B, NC), jnp.float32),   # logits
            jax.ShapeDtypeStruct((B, F), jnp.float32),    # features
        ),
        grid_spec=pltpu.PrefetchScalarGridSpec(
            num_scalar_prefetch=0,
            grid=grid,
            in_specs=[
                x_spec,
                pl.BlockSpec((block_b * C, F), lambda b, h: (0, 0)),
                pl.BlockSpec((block_b, block_b * C), lambda b, h: (0, 0)),
                pl.BlockSpec((1, F), lambda b, h: (0, 0)),
                pl.BlockSpec((F, NC), lambda b, h: (0, 0)),
                pl.BlockSpec((1, NC), lambda b, h: (0, 0)),
            ],
            out_specs=[
                pl.BlockSpec((block_b, NC), lambda b, h: (b, 0)),
                pl.BlockSpec((block_b, F), lambda b, h: (b, 0)),
            ],
            scratch_shapes=[pltpu.VMEM((block_b * C, 128), jnp.float32)],
        ),
        compiler_params=pltpu.CompilerParams(
            dimension_semantics=("parallel", "arbitrary"),
            vmem_limit_bytes=vmem_limit,
        ),
        cost_estimate=cost,
    )(x_flat, wf_rows, bsum, bf, wh, bh)

    return logits, features


if __name__ == "__main__":
    # Small shapes consistent with an image-classification inspector model.
    B, C, H, W = 2, 4, 16, 16       # NCHW input
    N_FEATURES = 32                 # penultimate feature dim (n_features)
    N_CLASSES = 8                   # classification head size (n_classes)

    key = jax.random.PRNGKey(0)
    k_x, k_wf, k_bf, k_wh, k_bh = jax.random.split(key, 5)

    x = jax.random.normal(k_x, (B, C, H, W), dtype=jnp.float32)

    # pretraining_input_mean / pretraining_input_std (per channel, deterministic).
    mean = jnp.linspace(0.4, 0.5, C, dtype=jnp.float32)
    std = jnp.linspace(0.2, 0.3, C, dtype=jnp.float32)

    # Backbone feature projection + classification head parameters.
    w_feat = jax.random.normal(k_wf, (C, N_FEATURES), dtype=jnp.float32) * 0.1
    b_feat = jax.random.normal(k_bf, (N_FEATURES,), dtype=jnp.float32) * 0.01
    w_head = jax.random.normal(k_wh, (N_FEATURES, N_CLASSES), dtype=jnp.float32) * 0.1
    b_head = jax.random.normal(k_bh, (N_CLASSES,), dtype=jnp.float32) * 0.01

    # Reference (pure JAX, un-folded math) for InspectorModelOutput.
    x_norm = (x - mean[None, :, None, None]) / std[None, :, None, None]
    pooled = x_norm.mean(axis=(2, 3))
    feats_ref = pooled @ w_feat + b_feat
    logits_ref = feats_ref @ w_head + b_head

    # Default path: full-HW contiguous rows, one grid step along the spatial axis.
    logits, features = inspector_forward(
        x, mean, std, w_feat, b_feat, w_head, b_head)
    jax.block_until_ready((logits, features))
    assert jnp.allclose(features, feats_ref, atol=1e-4), "features mismatch (full-HW)"
    assert jnp.allclose(logits, logits_ref, atol=1e-4), "logits mismatch (full-HW)"

    # Forced spatial tiling (grid=(1, 2)) to exercise the multi-step
    # pl.when init/accumulate/finalize path.
    logits2, features2 = inspector_forward(
        x, mean, std, w_feat, b_feat, w_head, b_head, block_hw=128)
    jax.block_until_ready((logits2, features2))
    assert jnp.allclose(features2, feats_ref, atol=1e-4), "features mismatch (tiled-HW)"
    assert jnp.allclose(logits2, logits_ref, atol=1e-4), "logits mismatch (tiled-HW)"

    # TODO(synk): abstract host-side methods (setup/set_classification_head,
    # n_classes/n_features/is_normalized properties) are bookkeeping with no
    # kernel equivalent; only the forward compute is implemented.
    print("KERNEL_OK")
</pallas_src>

<mosaic_0001>
module attributes {stable_mosaic.version = 11 : i64} {
  func.func @_inspector_kernel(%arg0: i32, %arg1: i32, %arg2: memref<8x256xf32, #tpu.memory_space<vmem>>, %arg3: memref<8x32xf32, #tpu.memory_space<vmem>>, %arg4: memref<2x8xf32, #tpu.memory_space<vmem>>, %arg5: memref<1x32xf32, #tpu.memory_space<vmem>>, %arg6: memref<32x8xf32, #tpu.memory_space<vmem>>, %arg7: memref<1x8xf32, #tpu.memory_space<vmem>>, %arg8: memref<2x8xf32, #tpu.memory_space<vmem>>, %arg9: memref<2x32xf32, #tpu.memory_space<vmem>>, %arg10: memref<8x128xf32, #tpu.memory_space<vmem>>) attributes {dimension_semantics = [#tpu.dimension_semantics<parallel>, #tpu.dimension_semantics<arbitrary>], iteration_bounds = array<i64: 1, 1>, scalar_prefetch = 0 : i64, scratch_operands = 1 : i64, tpu.core_type = #tpu.core_type<tc>, window_params = [{transform_indices = @transform_0, window_bounds = array<i64: 8, 256>}, {pipeline_mode = #tpu.pipeline_mode<synchronous>, transform_indices = @transform_1, window_bounds = array<i64: 8, 32>}, {pipeline_mode = #tpu.pipeline_mode<synchronous>, transform_indices = @transform_2, window_bounds = array<i64: 2, 8>}, {pipeline_mode = #tpu.pipeline_mode<synchronous>, transform_indices = @transform_3, window_bounds = array<i64: 1, 32>}, {pipeline_mode = #tpu.pipeline_mode<synchronous>, transform_indices = @transform_4, window_bounds = array<i64: 32, 8>}, {pipeline_mode = #tpu.pipeline_mode<synchronous>, transform_indices = @transform_5, window_bounds = array<i64: 1, 8>}, {transform_indices = @transform_6, window_bounds = array<i64: 2, 8>}, {transform_indices = @transform_7, window_bounds = array<i64: 2, 32>}]} {
    %c0_i32 = arith.constant 0 : i32
    %0 = arith.cmpi eq, %arg1, %c0_i32 : i32
    %1 = arith.extui %0 : i1 to i32
    %c0_i32_0 = arith.constant 0 : i32
    %2 = arith.cmpi ne, %1, %c0_i32_0 : i32
    scf.if %2 {
      %cst_9 = arith.constant 0.000000e+00 : f32
      %14 = vector.broadcast %cst_9 : f32 to vector<8x128xf32>
      %c0_10 = arith.constant 0 : index
      %c0_11 = arith.constant 0 : index
      %15 = vector.load %arg10[%c0_10, %c0_11] : memref<8x128xf32, #tpu.memory_space<vmem>>, vector<8x128xf32>
      tpu.vector_store %arg10[%c0_10, %c0_11], %14 {strides = array<i32>} : memref<8x128xf32, #tpu.memory_space<vmem>>, vector<8x128xf32>,
    } else {
    }
    %cst = arith.constant 0.000000e+00 : f32
    %3 = vector.broadcast %cst : f32 to vector<8x128xf32>
    %c0 = arith.constant 0 : index
    %c0_1 = arith.constant 0 : index
    %4 = vector.load %arg2[%c0, %c0_1] : memref<8x256xf32, #tpu.memory_space<vmem>>, vector<8x128xf32>
    %5 = arith.addf %3, %4 : vector<8x128xf32>
    %c0_2 = arith.constant 0 : index
    %c128 = arith.constant 128 : index
    %6 = vector.load %arg2[%c0_2, %c128] : memref<8x256xf32, #tpu.memory_space<vmem>>, vector<8x128xf32>
    %7 = arith.addf %5, %6 : vector<8x128xf32>
    %c0_3 = arith.constant 0 : index
    %c0_4 = arith.constant 0 : index
    %8 = vector.load %arg10[%c0_3, %c0_4] : memref<8x128xf32, #tpu.memory_space<vmem>>, vector<8x128xf32>
    %9 = arith.addf %8, %7 : vector<8x128xf32>
    %c0_5 = arith.constant 0 : index
    %c0_6 = arith.constant 0 : index
    %10 = vector.load %arg10[%c0_5, %c0_6] : memref<8x128xf32, #tpu.memory_space<vmem>>, vector<8x128xf32>
    tpu.vector_store %arg10[%c0_5, %c0_6], %9 {strides = array<i32>} : memref<8x128xf32, #tpu.memory_space<vmem>>, vector<8x128xf32>,
    %c0_i32_7 = arith.constant 0 : i32
    %11 = arith.cmpi eq, %arg1, %c0_i32_7 : i32
    %12 = arith.extui %11 : i1 to i32
    %c0_i32_8 = arith.constant 0 : i32
    %13 = arith.cmpi ne, %12, %c0_i32_8 : i32
    scf.if %13 {
      %c0_9 = arith.constant 0 : index
      %c0_10 = arith.constant 0 : index
      %14 = vector.load %arg10[%c0_9, %c0_10] : memref<8x128xf32, #tpu.memory_space<vmem>>, vector<8x128xf32>
      %cst_11 = arith.constant dense<0.000000e+00> : vector<8xf32>
      %15 = vector.multi_reduction <add>, %14, %cst_11 [1] : vector<8x128xf32> to vector<8xf32>
      %16 = vector.shape_cast %15 : vector<8xf32> to vector<8x1xf32>
      %c0_12 = arith.constant 0 : index
      %c0_13 = arith.constant 0 : index
      %17 = vector.load %arg3[%c0_12, %c0_13] : memref<8x32xf32, #tpu.memory_space<vmem>>, vector<8x32xf32>
      %18 = vector.broadcast %16 : vector<8x1xf32> to vector<8x32xf32>
      %19 = arith.mulf %18, %17 : vector<8x32xf32>
      %c0_14 = arith.constant 0 : index
      %c0_15 = arith.constant 0 : index
      %20 = vector.load %arg4[%c0_14, %c0_15] : memref<2x8xf32, #tpu.memory_space<vmem>>, vector<2x8xf32>
      %cst_16 = arith.constant dense<0.000000e+00> : vector<2x32xf32>
      %21 = tpu.matmul %20, %19, %cst_16 {dimension_numbers = #tpu.dot_dimension_numbers<[1], [0], [0], [1], [0, 0, 1, 1], [], []>} : vector<2x8xf32>, vector<8x32xf32>, vector<2x32xf32> -> vector<2x32xf32>
      %c0_17 = arith.constant 0 : index
      %c0_18 = arith.constant 0 : index
      %22 = vector.load %arg5[%c0_17, %c0_18] : memref<1x32xf32, #tpu.memory_space<vmem>>, vector<1x32xf32>
      %23 = vector.broadcast %22 : vector<1x32xf32> to vector<2x32xf32>
      %24 = arith.addf %21, %23 : vector<2x32xf32>
      %c0_19 = arith.constant 0 : index
      %c0_20 = arith.constant 0 : index
      %25 = vector.load %arg9[%c0_19, %c0_20] : memref<2x32xf32, #tpu.memory_space<vmem>>, vector<2x32xf32>
      tpu.vector_store %arg9[%c0_19, %c0_20], %24 {strides = array<i32>} : memref<2x32xf32, #tpu.memory_space<vmem>>, vector<2x32xf32>,
      %c0_21 = arith.constant 0 : index
      %c0_22 = arith.constant 0 : index
      %26 = vector.load %arg6[%c0_21, %c0_22] : memref<32x8xf32, #tpu.memory_space<vmem>>, vector<32x8xf32>
      %cst_23 = arith.constant dense<0.000000e+00> : vector<2x8xf32>
      %27 = tpu.matmul %24, %26, %cst_23 {dimension_numbers = #tpu.dot_dimension_numbers<[1], [0], [0], [1], [0, 0, 1, 1], [], []>} : vector<2x32xf32>, vector<32x8xf32>, vector<2x8xf32> -> vector<2x8xf32>
      %c0_24 = arith.constant 0 : index
      %c0_25 = arith.constant 0 : index
      %28 = vector.load %arg7[%c0_24, %c0_25] : memref<1x8xf32, #tpu.memory_space<vmem>>, vector<1x8xf32>
      %29 = vector.broadcast %28 : vector<1x8xf32> to vector<2x8xf32>
      %30 = arith.addf %27, %29 : vector<2x8xf32>
      %c0_26 = arith.constant 0 : index
      %c0_27 = arith.constant 0 : index
      %31 = vector.load %arg8[%c0_26, %c0_27] : memref<2x8xf32, #tpu.memory_space<vmem>>, vector<2x8xf32>
      tpu.vector_store %arg8[%c0_26, %c0_27], %30 {strides = array<i32>} : memref<2x8xf32, #tpu.memory_space<vmem>>, vector<2x8xf32>,
    } else {
    }
    return
  }
  func.func @transform_0(%arg0: i32, %arg1: i32) -> (i32, i32) {
    %c0_i32 = arith.constant 0 : i32
    return %arg0, %arg1 : i32, i32
  }
  func.func @transform_1(%arg0: i32, %arg1: i32) -> (i32, i32) {
    %c0_i32 = arith.constant 0 : i32
    %c0_i32_0 = arith.constant 0 : i32
    %c0_i32_1 = arith.constant 0 : i32
    return %c0_i32, %c0_i32_0 : i32, i32
  }
  func.func @transform_2(%arg0: i32, %arg1: i32) -> (i32, i32) {
    %c0_i32 = arith.constant 0 : i32
    %c0_i32_0 = arith.constant 0 : i32
    %c0_i32_1 = arith.constant 0 : i32
    return %c0_i32, %c0_i32_0 : i32, i32
  }
  func.func @transform_3(%arg0: i32, %arg1: i32) -> (i32, i32) {
    %c0_i32 = arith.constant 0 : i32
    %c0_i32_0 = arith.constant 0 : i32
    %c0_i32_1 = arith.constant 0 : i32
    return %c0_i32, %c0_i32_0 : i32, i32
  }
  func.func @transform_4(%arg0: i32, %arg1: i32) -> (i32, i32) {
    %c0_i32 = arith.constant 0 : i32
    %c0_i32_0 = arith.constant 0 : i32
    %c0_i32_1 = arith.constant 0 : i32
    return %c0_i32, %c0_i32_0 : i32, i32
  }
  func.func @transform_5(%arg0: i32, %arg1: i32) -> (i32, i32) {
    %c0_i32 = arith.constant 0 : i32
    %c0_i32_0 = arith.constant 0 : i32
    %c0_i32_1 = arith.constant 0 : i32
    return %c0_i32, %c0_i32_0 : i32, i32
  }
  func.func @transform_6(%arg0: i32, %arg1: i32) -> (i32, i32) {
    %c0_i32 = arith.constant 0 : i32
    %c0_i32_0 = arith.constant 0 : i32
    return %arg0, %c0_i32 : i32, i32
  }
  func.func @transform_7(%arg0: i32, %arg1: i32) -> (i32, i32) {
    %c0_i32 = arith.constant 0 : i32
    %c0_i32_0 = arith.constant 0 : i32
    return %arg0, %c0_i32 : i32, i32
  }
}

</mosaic_0001>

<llo_original>
// kernel: tpu_custom_call.1
$region0: #{tpu_custom_call.1}
  #allocation0 [shape = 'u32[]', space=smem, size = 0x4, offset = 0x4, fixed_abs, tag = 'smem constant byte address 0x4 - core index']
  #allocation1 [shape = 'u32[144,128]{1,0:T(1,128)}', space=vmem, size = 0x12000, scoped, tag = 'internal scratch']
  #allocation2 [shape = 'f32[8,128]{1,0:T(8,128)}', space=vmem, size = 0x1000, scoped, tag = 'scratch operand']
  %s0 = inlined_call_operand.vmem [shape: f32[8,256], index: 0, kind: input, shape index: {}]
  %s1 = inlined_call_operand.vmem [shape: f32[8,32], index: 1, kind: input, shape index: {}]
  %s2 = inlined_call_operand.vmem [shape: f32[2,8], index: 2, kind: input, shape index: {}]
  %s3 = inlined_call_operand.vmem [shape: f32[1,32], index: 3, kind: input, shape index: {}]
  %s4 = inlined_call_operand.vmem [shape: f32[32,8], index: 4, kind: input, shape index: {}]
  %s5 = inlined_call_operand.vmem [shape: f32[1,8], index: 5, kind: input, shape index: {}]
  %s6 = inlined_call_operand.hbm [shape: f32[2,8], index: 6, kind: output, shape index: {0}]
  %s7 = inlined_call_operand.hbm [shape: f32[2,32], index: 7, kind: output, shape index: {1}]
  %8 = xla_tuple %s6, %s7
  %s9 = sld [smem:[#allocation0]]
  $region50: #{tpu_custom_call.1} parent=0
    _
  %s11 = ssub.s32 1, %s9
  %s12 = scalar_select 0, %s11, %s9
  $region1: #{tpu_custom_call.1} parent=0
    #allocation3 [shape = 'u8[1024]{0}', space=vmem, size = 0x400, scoped, tag = 'output window, operand 0, single buffered']
    #allocation4 [shape = 's32[1]{0}', space=sflag, size = 0x4, scoped, tag = 'scoped memory for tpu_custom_call.1']
    #allocation5 [shape = 'u8[1024]{0}', space=vmem, size = 0x400, scoped, tag = 'output window, operand 1, single buffered']
    #allocation6 [shape = 's32[1]{0}', space=sflag, size = 0x4, scoped, tag = 'scoped memory for tpu_custom_call.1']
    %13 = vsyncpa [#allocation4], 0
    %14 = vsyncpa [#allocation6], 0
    // Predicated region
    $region2: #{tpu_custom_call.1} parent=1 // pred_check
      _
    $region3: #{tpu_custom_call.1} parent=1 // pred_check_branch
      %16 = sbr.rel (0) target = $region5
    $region4: #{tpu_custom_call.1} parent=1 // pred_region
      _
    $region5: #{tpu_custom_call.1} parent=1 // pred_fallthru
      _
    // Predicated region
    $region6: #{tpu_custom_call.1} parent=1 // pred_check
      _
    $region7: #{tpu_custom_call.1} parent=1 // pred_check_branch
      %18 = sbr.rel (0) target = $region9
    $region8: #{tpu_custom_call.1} parent=1 // pred_region
      _
    $region9: #{tpu_custom_call.1} parent=1 // pred_fallthru
      _
    // Predicated region
    $region10: #{tpu_custom_call.1} parent=1 // pred_check
      _
    $region11: #{tpu_custom_call.1} parent=1 // pred_check_branch
      %20 = sbr.rel (0) target = $region13
    $region12: #{tpu_custom_call.1} parent=1 // pred_region
      _
    $region13: #{tpu_custom_call.1} parent=1 // pred_fallthru
      _
    // Predicated region
    $region14: #{tpu_custom_call.1} parent=1 // pred_check
      _
    $region15: #{tpu_custom_call.1} parent=1 // pred_check_branch
      %22 = sbr.rel (0) target = $region17
    $region16: #{tpu_custom_call.1} parent=1 // pred_region
      _
    $region17: #{tpu_custom_call.1} parent=1 // pred_fallthru
      _
    // Predicated region
    $region18: #{tpu_custom_call.1} parent=1 // pred_check
      _
    $region19: #{tpu_custom_call.1} parent=1 // pred_check_branch
      %24 = sbr.rel (0) target = $region21
    $region20: #{tpu_custom_call.1} parent=1 // pred_region
      _
    $region21: #{tpu_custom_call.1} parent=1 // pred_fallthru
      _
    // Predicated region
    $region22: #{tpu_custom_call.1} parent=1 // pred_check
      _
    $region23: #{tpu_custom_call.1} parent=1 // pred_check_branch
      %26 = sbr.rel (0) target = $region25
    $region24: #{tpu_custom_call.1} parent=1 // pred_region
      _
    $region25: #{tpu_custom_call.1} parent=1 // pred_fallthru
      _
    %p27 = scmp.eq.s32.totalorder 0, 0
    // Predicated region
    $region26: #{tpu_custom_call.1} parent=1 // pred_check
      %p28 = pneg %p27
    $region27: #{tpu_custom_call.1} parent=1 // pred_check_branch
      %30 = sbr.rel (%p28) target = $region29
    $region28: #{tpu_custom_call.1} parent=1 // pred_region
      %31 = vst [vmem:[#allocation2] sm:$0xff] 0.0
    $region29: #{tpu_custom_call.1} parent=1 // pred_fallthru
      _
    %v32 = vld [vmem:[%s0] sm:$0xff]
    %v33 = vadd.f32 %v32, 0.0
    %v34 = vld [vmem:[%s0 + $0x8] sm:$0xff]
    %v35 = vadd.f32 %v33, %v34
    %v36 = vld [vmem:[#allocation2] sm:$0xff]
    %v37 = vadd.f32 %v36, %v35
    %38 = vst [vmem:[#allocation2] sm:$0xff] %v37
    // Predicated region
    $region30: #{tpu_custom_call.1} parent=1 // pred_check
      %p39 = pneg %p27
    $region31: #{tpu_custom_call.1} parent=1 // pred_check_branch
      %41 = sbr.rel (%p39) target = $region33
    $region32: #{tpu_custom_call.1} parent=1 // pred_region
      %v42 = vld [vmem:[#allocation2] sm:$0xff]
      %43 = vadd.xlane.f32.xlu0 %v42
      %v44 = vpop.xlane.xlu0 %43
      %v45 = vld [vmem:[%s1] sm:$0xff]
      %v46 = vmul.f32 %v44, %v45
      %v47 = vld [vmem:[%s2] sm:$0x3]
      %v48 = vld [vmem:[%s3] sm:$0x1]
      %v50 = vlaneseq
      %v51 = vshrl.u32 %v50, 7
      %v52 = vsub.s32 0, %v51
      %v53 = vrot.slane %v48, %v52
      %vm55 = vcmask 64512
      %v57 = vsel %vm55, %v47, 0
      %59 = vmatprep.subr.mxu0 0.0
      %60 = vmatpush1.msra.mxu0 0.0
      %61 = vmatprep.subr.mxu0 0.0
      %62 = vmatpush1.msra.mxu0 0.0
      %63 = vmatprep.subr.mxu0 0.0
      %64 = vmatpush1.msra.mxu0 0.0
      %65 = vmatprep.subr.mxu0 0.0
      %66 = vmatpush1.msra.mxu0 0.0
      %67 = vmatprep.subr.mxu0 0.0
      %68 = vmatpush1.msra.mxu0 0.0
      %69 = vmatprep.subr.mxu0 0.0
      %70 = vmatpush1.msra.mxu0 0.0
      %71 = vmatprep.subr.mxu0 0.0
      %72 = vmatpush1.msra.mxu0 0.0
      %73 = vmatprep.subr.mxu0 0.0
      %74 = vmatpush1.msra.mxu0 0.0
      %75 = vmatprep.subr.mxu0 0.0
      %76 = vmatpush1.msra.mxu0 0.0
      %77 = vmatprep.subr.mxu0 0.0
      %78 = vmatpush1.msra.mxu0 0.0
      %79 = vmatprep.subr.mxu0 0.0
      %80 = vmatpush1.msra.mxu0 0.0
      %81 = vmatprep.subr.mxu0 0.0
      %82 = vmatpush1.msra.mxu0 0.0
      %83 = vmatprep.subr.mxu0 0.0
      %84 = vmatpush1.msra.mxu0 0.0
      %85 = vmatprep.subr.mxu0 0.0
      %86 = vmatpush1.msra.mxu0 0.0
      %87 = vmatprep.subr.mxu0 0.0
      %88 = vmatpush1.msra.mxu0 0.0
      %89 = vmatprep.subr.mxu0 0.0
      %90 = vmatpush1.msra.mxu0 %v46
      %91 = vmatprep.subr.mxu0 0.0
      %92 = vmatpush2.msra.mxu0 0.0
      %93 = vmatprep.subr.mxu0 0.0
      %94 = vmatpush2.msra.mxu0 0.0
      %95 = vmatprep.subr.mxu0 0.0
      %96 = vmatpush2.msra.mxu0 0.0
      %97 = vmatprep.subr.mxu0 0.0
      %98 = vmatpush2.msra.mxu0 0.0
      %99 = vmatprep.subr.mxu0 0.0
      %100 = vmatpush2.msra.mxu0 0.0
      %101 = vmatprep.subr.mxu0 0.0
      %102 = vmatpush2.msra.mxu0 0.0
      %103 = vmatprep.subr.mxu0 0.0
      %104 = vmatpush2.msra.mxu0 0.0
      %105 = vmatprep.subr.mxu0 0.0
      %106 = vmatpush2.msra.mxu0 0.0
      %107 = vmatprep.subr.mxu0 0.0
      %108 = vmatpush2.msra.mxu0 0.0
      %109 = vmatprep.subr.mxu0 0.0
      %110 = vmatpush2.msra.mxu0 0.0
      %111 = vmatprep.subr.mxu0 0.0
      %112 = vmatpush2.msra.mxu0 0.0
      %113 = vmatprep.subr.mxu0 0.0
      %114 = vmatpush2.msra.mxu0 0.0
      %115 = vmatprep.subr.mxu0 0.0
      %116 = vmatpush2.msra.mxu0 0.0
      %117 = vmatprep.subr.mxu0 0.0
      %118 = vmatpush2.msra.mxu0 0.0
      %119 = vmatprep.subr.mxu0 0.0
      %120 = vmatpush2.msra.mxu0 0.0
      %121 = vmatprep.subr.mxu0 0.0
      %122 = vmatpush2.msra.mxu0 0.0
      %123 = vmatprep.mubr.f32.mxu0 0.0
      %124 = vmatmul.mubr.f32.gmra.mxu0 %v57
      %v125 = vpop.f32.mrf.mxu0
      %v126 = vadd.f32 %v53, %v125
      %v127 = vpop.f32.mrf.mxu0
      %128 = vdwg.mxu0
      %vm129 = vcmask 254976
      %130 = vst.msk [vmem:[#allocation5] sm:$0x3] %vm129, %v126
      %v131 = vld [vmem:[%s4] sm:$0xff]
      %v132 = vld [vmem:[%s4 + $0x8] sm:$0xff]
      %v133 = vld [vmem:[%s4 + $0x10] sm:$0xff]
      %v134 = vld [vmem:[%s4 + $0x18] sm:$0xff]
      %v135 = vld [vmem:[%s5] sm:$0x1]
      %v137 = vlaneseq
      %v138 = vshrl.u32 %v137, 7
      %v139 = vsub.s32 0, %v138
      %v140 = vrot.slane %v135, %v139
      %vm142 = vcmask 261120
      %v144 = vsel %vm142, %v126, 0
      %146 = vmatprep.subr.mxu0 0.0
      %147 = vmatpush1.msra.mxu0 0.0
      %148 = vmatprep.subr.mxu0 0.0
      %149 = vmatpush1.msra.mxu0 0.0
      %150 = vmatprep.subr.mxu0 0.0
      %151 = vmatpush1.msra.mxu0 0.0
      %152 = vmatprep.subr.mxu0 0.0
      %153 = vmatpush1.msra.mxu0 0.0
      %154 = vmatprep.subr.mxu0 0.0
      %155 = vmatpush1.msra.mxu0 0.0
      %156 = vmatprep.subr.mxu0 0.0
      %157 = vmatpush1.msra.mxu0 0.0
      %158 = vmatprep.subr.mxu0 0.0
      %159 = vmatpush1.msra.mxu0 0.0
      %160 = vmatprep.subr.mxu0 0.0
      %161 = vmatpush1.msra.mxu0 0.0
      %162 = vmatprep.subr.mxu0 0.0
      %163 = vmatpush1.msra.mxu0 0.0
      %164 = vmatprep.subr.mxu0 0.0
      %165 = vmatpush1.msra.mxu0 0.0
      %166 = vmatprep.subr.mxu0 0.0
      %167 = vmatpush1.msra.mxu0 0.0
      %168 = vmatprep.subr.mxu0 0.0
      %169 = vmatpush1.msra.mxu0 0.0
      %170 = vmatprep.subr.mxu0 0.0
      %171 = vmatpush1.msra.mxu0 %v134
      %172 = vmatprep.subr.mxu0 0.0
      %173 = vmatpush1.msra.mxu0 %v133
      %174 = vmatprep.subr.mxu0 0.0
      %175 = vmatpush1.msra.mxu0 %v132
      %176 = vmatprep.subr.mxu0 0.0
      %177 = vmatpush1.msra.mxu0 %v131
      %178 = vmatprep.subr.mxu0 0.0
      %179 = vmatpush2.msra.mxu0 0.0
      %180 = vmatprep.subr.mxu0 0.0
      %181 = vmatpush2.msra.mxu0 0.0
      %182 = vmatprep.subr.mxu0 0.0
      %183 = vmatpush2.msra.mxu0 0.0
      %184 = vmatprep.subr.mxu0 0.0
      %185 = vmatpush2.msra.mxu0 0.0
      %186 = vmatprep.subr.mxu0 0.0
      %187 = vmatpush2.msra.mxu0 0.0
      %188 = vmatprep.subr.mxu0 0.0
      %189 = vmatpush2.msra.mxu0 0.0
      %190 = vmatprep.subr.mxu0 0.0
      %191 = vmatpush2.msra.mxu0 0.0
      %192 = vmatprep.subr.mxu0 0.0
      %193 = vmatpush2.msra.mxu0 0.0
      %194 = vmatprep.subr.mxu0 0.0
      %195 = vmatpush2.msra.mxu0 0.0
      %196 = vmatprep.subr.mxu0 0.0
      %197 = vmatpush2.msra.mxu0 0.0
      %198 = vmatprep.subr.mxu0 0.0
      %199 = vmatpush2.msra.mxu0 0.0
      %200 = vmatprep.subr.mxu0 0.0
      %201 = vmatpush2.msra.mxu0 0.0
      %202 = vmatprep.subr.mxu0 0.0
      %203 = vmatpush2.msra.mxu0 0.0
      %204 = vmatprep.subr.mxu0 0.0
      %205 = vmatpush2.msra.mxu0 0.0
      %206 = vmatprep.subr.mxu0 0.0
      %207 = vmatpush2.msra.mxu0 0.0
      %208 = vmatprep.subr.mxu0 0.0
      %209 = vmatpush2.msra.mxu0 0.0
      %210 = vmatprep.mubr.f32.mxu0 0.0
      %211 = vmatmul.mubr.f32.gmra.mxu0 %v144
      %v212 = vpop.f32.mrf.mxu0
      %v213 = vadd.f32 %v140, %v212
      %v214 = vpop.f32.mrf.mxu0
      %215 = vdwg.mxu0
      %vm216 = vcmask 58368
      %217 = vst.msk [vmem:[#allocation3] sm:$0x3] %vm216, %v213
    $region33: #{tpu_custom_call.1} parent=1 // pred_fallthru
      _
    // Predicated region
    $region34: #{tpu_custom_call.1} parent=1 // pred_check
      _
    $region35: #{tpu_custom_call.1} parent=1 // pred_check_branch
      %219 = sbr.rel (0) target = $region37
    $region36: #{tpu_custom_call.1} parent=1 // pred_region
      %s221 = ssub.s32 32, 32
      %222 = vsyncadd [#allocation4], %s221
      %s224 = sshll.u32 [#allocation3], 4
      %s225 = int_to_ptr.vmem [resolvable:$true] %s224
      %227 = dma.vmem_to_hbm [thread:$0]  %s225, 32, %s6, [#allocation4]
    $region37: #{tpu_custom_call.1} parent=1 // pred_fallthru
      _
    // Predicated region
    $region38: #{tpu_custom_call.1} parent=1 // pred_check
      _
    $region39: #{tpu_custom_call.1} parent=1 // pred_check_branch
      %229 = sbr.rel (0) target = $region41
    $region40: #{tpu_custom_call.1} parent=1 // pred_region
      %s231 = ssub.s32 32, 32
      %232 = vsyncadd [#allocation6], %s231
      %s234 = sshll.u32 [#allocation5], 4
      %s235 = int_to_ptr.vmem [resolvable:$true] %s234
      %237 = dma.vmem_to_hbm [thread:$0]  %s235, 32, %s7, [#allocation6]
    $region41: #{tpu_custom_call.1} parent=1 // pred_fallthru
      _
    // Predicated region
    $region42: #{tpu_custom_call.1} parent=1 // pred_check
      _
    $region43: #{tpu_custom_call.1} parent=1 // pred_check_branch
      %239 = sbr.rel (0) target = $region45
    $region44: #{tpu_custom_call.1} parent=1 // pred_region
      %240 = dma.done [#allocation4], 32
    $region45: #{tpu_custom_call.1} parent=1 // pred_fallthru
      _
    // Predicated region
    $region46: #{tpu_custom_call.1} parent=1 // pred_check
      _
    $region47: #{tpu_custom_call.1} parent=1 // pred_check_branch
      %242 = sbr.rel (0) target = $region49
    $region48: #{tpu_custom_call.1} parent=1 // pred_region
      %243 = dma.done [#allocation6], 32
    $region49: #{tpu_custom_call.1} parent=1 // pred_fallthru
      _
    %244 = vsyncpa [#allocation4], 1
    %245 = vsyncpa [#allocation6], 1

</llo_original>
